<compile_context>
chip_gen: v6e
topology: v6e:2x2x1
jax: 0.10.0
libtpu: 0.0.40
codegen_flags: <defaults>
</compile_context>

<pallas_src>
import numpy as np

import jax
import jax.numpy as jnp
from jax.experimental import pallas as pl
from jax.experimental.pallas import tpu as pltpu

_MIB = 1024 * 1024


def _round_up(x, m):
    return ((x + m - 1) // m) * m


# ---------------------------------------------------------------------------
# Kernels
# ---------------------------------------------------------------------------

def _ffn_resident_kernel(x_ref, w1_ref, b1_ref, w2_ref, b2_ref, o_ref):
    # x: (tm, dimp) f32; w1: (dimp, hidp) bf16; b1: (1, hidp) f32
    # w2: (hidp, dimp) bf16; b2: (1, dimp) f32; o: (tm, dimp)
    xb = x_ref[...].astype(w1_ref.dtype)                       # f32 -> bf16 on the VPU
    h = jnp.dot(xb, w1_ref[...], preferred_element_type=jnp.float32)
    h = h + b1_ref[...]
    h = h * jax.nn.sigmoid(h)                                  # SiLU in f32 (VPU + EUP)
    out = jnp.dot(h.astype(w2_ref.dtype), w2_ref[...],
                  preferred_element_type=jnp.float32)
    o_ref[...] = (out + b2_ref[...]).astype(o_ref.dtype)


def _ffn_streamed_kernel(x_ref, w1_ref, b1_ref, w2_ref, b2_ref, o_ref, acc_ref):
    # Grid: (M tiles [parallel], hidden chunks [arbitrary, last]).
    # x: (tm, dimp) f32; w1 chunk: (dimp, tk) bf16; b1 chunk: (1, tk) f32
    # w2 chunk: (tk, dimp) bf16; b2: (1, dimp) f32; acc: (tm, dimp) f32 scratch.
    h_id = pl.program_id(1)

    @pl.when(h_id == 0)
    def _():
        acc_ref[...] = jnp.zeros_like(acc_ref)

    xb = x_ref[...].astype(w1_ref.dtype)
    h = jnp.dot(xb, w1_ref[...], preferred_element_type=jnp.float32)
    h = h + b1_ref[...]
    h = h * jax.nn.sigmoid(h)
    acc_ref[...] += jnp.dot(h.astype(w2_ref.dtype), w2_ref[...],
                            preferred_element_type=jnp.float32)

    @pl.when(h_id == pl.num_programs(1) - 1)
    def _():
        o_ref[...] = (acc_ref[...] + b2_ref[...]).astype(o_ref.dtype)


# ---------------------------------------------------------------------------
# Planning helpers
# ---------------------------------------------------------------------------

def _vmem_capacity_bytes():
    try:
        cap = int(pltpu.get_tpu_info().vmem_capacity_bytes)
        if cap > 0:
            return cap
    except Exception:
        pass
    return 64 * _MIB  # conservative default (v7x per-TC size)


def _device_kind():
    try:
        return jax.devices()[0].device_kind.lower()
    except Exception:
        return ""


def _stream_defaults(kind):
    # (tm default, hidden-chunk granule) that keep the streamed variant MXU-bound per chip.
    if "v5 lite" in kind or "v5e" in kind or "v5lite" in kind:
        return 256, 128
    if "v6" in kind:
        return 640, 256
    # v7x or unknown
    return 512, 256


# ---------------------------------------------------------------------------
# Wrapper
# ---------------------------------------------------------------------------

def feed_forward(x, w1, b1, w2, b2, *, tm=256, out_dtype=None,
                 force_stream=False, tk=None):
    """x: [B, S, dim]; w1: [dim, hidden]; b1: [hidden]; w2: [hidden, dim]; b2: [dim]."""
    B, S, dim = x.shape
    hidden = w1.shape[1]
    M = B * S
    out_dtype = x.dtype if out_dtype is None else out_dtype
    out_b = np.dtype(out_dtype).itemsize

    # Lane-dense padding of the feature dims (unmasked vst, full MXU feeds).
    dimp = _round_up(dim, 128)
    hidp = _round_up(hidden, 128)

    capacity = _vmem_capacity_bytes()
    budget = int(capacity * (0.70 if capacity <= 64 * _MIB else 0.75))

    kind = _device_kind()
    stream_tm_default, tk_granule = _stream_defaults(kind)

    # bf16 w1 + w2 (single-buffered, resident) + f32 biases.
    weight_bytes = 2 * dimp * hidp * 2 + (hidp + dimp) * 4

    def resident_bytes(t):
        return (weight_bytes
                + 2 * t * dimp * 4          # x tile, f32, double buffered
                + 2 * t * dimp * out_b      # out tile, double buffered
                + t * dimp * 2              # bf16 copy of x
                + t * hidp * 4              # h f32
                + t * hidp * 2              # h bf16 (MXU input)
                + t * dimp * 4)             # f32 out before cast

    def streamed_bytes(t, c):
        return (2 * t * dimp * 4 + 2 * t * dimp * out_b       # x / out tiles, double buffered
                + 2 * dimp * c * 2 + 2 * c * dimp * 2         # w1 / w2 chunks, double buffered
                + 2 * c * 4 + dimp * 4                        # b1 chunk (x2), b2
                + t * dimp * 4                                 # f32 accumulator scratch
                + t * dimp * 2 + t * c * 4 + t * c * 2         # bf16 x, h f32, h bf16
                + t * dimp * 4)                                # accumulator update temp

    # ---- resident plan -----------------------------------------------------
    tm_r = max(8, min(tm, _round_up(M, 8)))
    floor = min(128, tm_r)                  # never shrink below 128 (stream instead)
    while tm_r > floor and resident_bytes(tm_r) > budget:
        tm_r = max(floor, _round_up(tm_r // 2, 8))
    use_resident = (not force_stream) and resident_bytes(tm_r) <= budget

    tm_s = tk_s = None
    if use_resident:
        # Megacore (v7x): make sure the "parallel" M axis has >= 2 steps when M is big
        # enough so both TensorCores get work (weights are resident, so this is free).
        if M > 2 * 128 and _round_up(M, tm_r) // tm_r < 2:
            tm_r = _round_up((M + 1) // 2, 8)
        hid_pad = hidp
        Mp = _round_up(M, tm_r)
        est = resident_bytes(tm_r)
    else:
        # ---- streamed plan (hidden-dim grid axis, weights re-fetched per M tile) -----
        tm_s = max(8, min(stream_tm_default, _round_up(M, 8)))
        if tk is not None:
            tk_s = _round_up(int(tk), 128)
        else:
            tk_s = min(2048, _round_up(hidp, tk_granule))
            while tk_s > tk_granule and streamed_bytes(tm_s, tk_s) > budget:
                tk_s = max(tk_granule, _round_up(tk_s // 2, tk_granule))
        while tm_s > 128 and streamed_bytes(tm_s, tk_s) > budget:
            tm_s = max(128, _round_up(tm_s // 2, 8))
        # TODO(synk): if dimp alone is so large that even (tm=128, tk=granule) exceeds the
        # budget, also tile the model dimension (extra grid axis over dimp for x/w2/out).
        hid_pad = _round_up(hidden, tk_s)
        Mp = _round_up(M, tm_s)
        est = streamed_bytes(tm_s, tk_s)

    vmem_limit = int(min(capacity * 0.92, max(32 * _MIB, est * 1.35)))

    # ---- pad / cast operands (only when actually needed; x stays f32) -------
    x2d = x.reshape(M, dim)
    if Mp != M or dimp != dim:
        x2d = jnp.pad(x2d, ((0, Mp - M), (0, dimp - dim)))

    w1p = w1 if (dimp == dim and hid_pad == hidden) else jnp.pad(
        w1, ((0, dimp - dim), (0, hid_pad - hidden)))
    w2p = w2 if (hid_pad == hidden and dimp == dim) else jnp.pad(
        w2, ((0, hid_pad - hidden), (0, dimp - dim)))
    if w1p.dtype != jnp.bfloat16:
        w1p = w1p.astype(jnp.bfloat16)
    if w2p.dtype != jnp.bfloat16:
        w2p = w2p.astype(jnp.bfloat16)

    b1p = b1 if hid_pad == hidden else jnp.pad(b1, (0, hid_pad - hidden))
    b2p = b2 if dimp == dim else jnp.pad(b2, (0, dimp - dim))
    b1p = b1p.reshape(1, hid_pad).astype(jnp.float32)
    b2p = b2p.reshape(1, dimp).astype(jnp.float32)

    if use_resident:
        def _const(shape):
            # Constant index_map -> resident, single-buffered block (no wasted double buffer).
            return pl.BlockSpec(shape, lambda i: (0, 0), pipeline_mode=pl.Buffered(1))

        out2d = pl.pallas_call(
            _ffn_resident_kernel,
            out_shape=jax.ShapeDtypeStruct((Mp, dimp), out_dtype),
            grid_spec=pltpu.PrefetchScalarGridSpec(
                num_scalar_prefetch=0,
                grid=(Mp // tm_r,),
                in_specs=[
                    pl.BlockSpec((tm_r, dimp), lambda i: (i, 0)),   # x tile (double buffered)
                    _const((dimp, hid_pad)),                        # w1, resident
                    _const((1, hid_pad)),                           # b1
                    _const((hid_pad, dimp)),                        # w2, resident
                    _const((1, dimp)),                              # b2
                ],
                out_specs=pl.BlockSpec((tm_r, dimp), lambda i: (i, 0)),
            ),
            compiler_params=pltpu.CompilerParams(
                dimension_semantics=("parallel",),
                vmem_limit_bytes=vmem_limit,
            ),
        )(x2d, w1p, b1p, w2p, b2p)
    else:
        n_h = hid_pad // tk_s
        out2d = pl.pallas_call(
            _ffn_streamed_kernel,
            out_shape=jax.ShapeDtypeStruct((Mp, dimp), out_dtype),
            grid_spec=pltpu.PrefetchScalarGridSpec(
                num_scalar_prefetch=0,
                grid=(Mp // tm_s, n_h),
                in_specs=[
                    pl.BlockSpec((tm_s, dimp), lambda i, h: (i, 0)),   # x tile (reused over h)
                    pl.BlockSpec((dimp, tk_s), lambda i, h: (0, h)),   # streamed w1 chunk
                    pl.BlockSpec((1, tk_s), lambda i, h: (0, h)),      # streamed b1 chunk
                    pl.BlockSpec((tk_s, dimp), lambda i, h: (h, 0)),   # streamed w2 chunk
                    pl.BlockSpec((1, dimp), lambda i, h: (0, 0),
                                 pipeline_mode=pl.Buffered(1)),        # b2, resident
                ],
                out_specs=pl.BlockSpec((tm_s, dimp), lambda i, h: (i, 0)),
                scratch_shapes=[pltpu.VMEM((tm_s, dimp), jnp.float32)],
            ),
            compiler_params=pltpu.CompilerParams(
                dimension_semantics=("parallel", "arbitrary"),
                vmem_limit_bytes=vmem_limit,
            ),
        )(x2d, w1p, b1p, w2p, b2p)

    out = out2d
    if Mp != M or dimp != dim:
        out = out[:M, :dim]
    return out.reshape(B, S, dim)


# ---------------------------------------------------------------------------
# Reference + test
# ---------------------------------------------------------------------------

def _reference(x, w1, b1, w2, b2):
    h = jnp.einsum("bsd,dh->bsh", x, w1) + b1
    h = h * jax.nn.sigmoid(h)
    return jnp.einsum("bsh,hd->bsd", h, w2) + b2


if __name__ == "__main__":
    key = jax.random.PRNGKey(0)

    def _params(k, dim, hidden):
        kw1, kb1, kw2, kb2 = jax.random.split(k, 4)
        # Mimics nn.Linear's uniform(-1/sqrt(fan_in), 1/sqrt(fan_in)) init.
        lim1 = 1.0 / jnp.sqrt(jnp.float32(dim))
        lim2 = 1.0 / jnp.sqrt(jnp.float32(hidden))
        w1 = jax.random.uniform(kw1, (dim, hidden), jnp.float32, -lim1, lim1)
        b1 = jax.random.uniform(kb1, (hidden,), jnp.float32, -lim1, lim1)
        w2 = jax.random.uniform(kw2, (hidden, dim), jnp.float32, -lim2, lim2)
        b2 = jax.random.uniform(kb2, (dim,), jnp.float32, -lim2, lim2)
        return w1, b1, w2, b2

    k0, k1, k2, k3 = jax.random.split(key, 4)

    # 1) Small FFN -> resident-weight plan.
    B, S, dim, hidden = 2, 8, 32, 64
    x = jax.random.normal(k0, (B, S, dim), dtype=jnp.float32)
    w1, b1, w2, b2 = _params(k1, dim, hidden)
    out = jax.block_until_ready(feed_forward(x, w1, b1, w2, b2))
    assert out.shape == (B, S, dim)
    assert bool(jnp.all(jnp.isfinite(out)))
    ref = _reference(x, w1, b1, w2, b2)
    err = float(jnp.max(jnp.abs(out - ref)))
    # Kernel uses bf16 MXU inputs with f32 accumulation; tolerance covers bf16 quantization.
    assert jnp.allclose(out, ref, atol=5e-2, rtol=5e-2), err

    # 2) Force the streamed (hidden-tiled) plan on a small problem to exercise the
    #    accumulator path (3 hidden chunks of 128).
    dim2, hidden2 = 32, 320
    x2 = jax.random.normal(k2, (B, S, dim2), dtype=jnp.float32)
    w1b, b1b, w2b, b2b = _params(k3, dim2, hidden2)
    out2 = jax.block_until_ready(
        feed_forward(x2, w1b, b1b, w2b, b2b, force_stream=True, tk=128))
    assert out2.shape == (B, S, dim2)
    assert bool(jnp.all(jnp.isfinite(out2)))
    ref2 = _reference(x2, w1b, b1b, w2b, b2b)
    err2 = float(jnp.max(jnp.abs(out2 - ref2)))
    assert jnp.allclose(out2, ref2, atol=5e-2, rtol=5e-2), err2

    print("KERNEL_OK")
</pallas_src>

<mosaic_0001>
module attributes {stable_mosaic.version = 11 : i64} {
  func.func @_ffn_resident_kernel(%arg0: i32, %arg1: memref<16x128xf32, #tpu.memory_space<vmem>>, %arg2: memref<128x128xbf16, #tpu.memory_space<vmem>>, %arg3: memref<1x128xf32, #tpu.memory_space<vmem>>, %arg4: memref<128x128xbf16, #tpu.memory_space<vmem>>, %arg5: memref<1x128xf32, #tpu.memory_space<vmem>>, %arg6: memref<16x128xf32, #tpu.memory_space<vmem>>) attributes {dimension_semantics = [#tpu.dimension_semantics<parallel>], iteration_bounds = array<i64: 1>, scalar_prefetch = 0 : i64, scratch_operands = 0 : i64, tpu.core_type = #tpu.core_type<tc>, window_params = [{transform_indices = @transform_0, window_bounds = array<i64: 16, 128>}, {pipeline_mode = #tpu.pipeline_mode<synchronous>, transform_indices = @transform_1, window_bounds = array<i64: 128, 128>}, {pipeline_mode = #tpu.pipeline_mode<synchronous>, transform_indices = @transform_2, window_bounds = array<i64: 1, 128>}, {pipeline_mode = #tpu.pipeline_mode<synchronous>, transform_indices = @transform_3, window_bounds = array<i64: 128, 128>}, {pipeline_mode = #tpu.pipeline_mode<synchronous>, transform_indices = @transform_4, window_bounds = array<i64: 1, 128>}, {transform_indices = @transform_5, window_bounds = array<i64: 16, 128>}]} {
    %c0 = arith.constant 0 : index
    %c0_0 = arith.constant 0 : index
    %0 = vector.load %arg1[%c0, %c0_0] : memref<16x128xf32, #tpu.memory_space<vmem>>, vector<16x128xf32>
    %1 = arith.truncf %0 : vector<16x128xf32> to vector<16x128xbf16>
    %c0_1 = arith.constant 0 : index
    %c0_2 = arith.constant 0 : index
    %2 = vector.load %arg2[%c0_1, %c0_2] : memref<128x128xbf16, #tpu.memory_space<vmem>>, vector<128x128xbf16>
    %cst = arith.constant dense<0.000000e+00> : vector<16x128xf32>
    %3 = tpu.matmul %1, %2, %cst {dimension_numbers = #tpu.dot_dimension_numbers<[1], [0], [0], [1], [0, 0, 1, 1], [], []>} : vector<16x128xbf16>, vector<128x128xbf16>, vector<16x128xf32> -> vector<16x128xf32>
    %c0_3 = arith.constant 0 : index
    %c0_4 = arith.constant 0 : index
    %4 = vector.load %arg3[%c0_3, %c0_4] : memref<1x128xf32, #tpu.memory_space<vmem>>, vector<1x128xf32>
    %5 = vector.broadcast %4 : vector<1x128xf32> to vector<16x128xf32>
    %6 = arith.addf %3, %5 : vector<16x128xf32>
    %7 = arith.negf %6 : vector<16x128xf32>
    %8 = math.exp %7 : vector<16x128xf32>
    %cst_5 = arith.constant 1.000000e+00 : f32
    %9 = vector.broadcast %cst_5 : f32 to vector<16x128xf32>
    %10 = arith.addf %9, %8 : vector<16x128xf32>
    %11 = arith.divf %9, %10 : vector<16x128xf32>
    %12 = arith.mulf %6, %11 : vector<16x128xf32>
    %13 = arith.truncf %12 : vector<16x128xf32> to vector<16x128xbf16>
    %c0_6 = arith.constant 0 : index
    %c0_7 = arith.constant 0 : index
    %14 = vector.load %arg4[%c0_6, %c0_7] : memref<128x128xbf16, #tpu.memory_space<vmem>>, vector<128x128xbf16>
    %cst_8 = arith.constant dense<0.000000e+00> : vector<16x128xf32>
    %15 = tpu.matmul %13, %14, %cst_8 {dimension_numbers = #tpu.dot_dimension_numbers<[1], [0], [0], [1], [0, 0, 1, 1], [], []>} : vector<16x128xbf16>, vector<128x128xbf16>, vector<16x128xf32> -> vector<16x128xf32>
    %c0_9 = arith.constant 0 : index
    %c0_10 = arith.constant 0 : index
    %16 = vector.load %arg5[%c0_9, %c0_10] : memref<1x128xf32, #tpu.memory_space<vmem>>, vector<1x128xf32>
    %17 = vector.broadcast %16 : vector<1x128xf32> to vector<16x128xf32>
    %18 = arith.addf %15, %17 : vector<16x128xf32>
    %c0_11 = arith.constant 0 : index
    %c0_12 = arith.constant 0 : index
    %19 = vector.load %arg6[%c0_11, %c0_12] : memref<16x128xf32, #tpu.memory_space<vmem>>, vector<16x128xf32>
    tpu.vector_store %arg6[%c0_11, %c0_12], %18 {strides = array<i32>} : memref<16x128xf32, #tpu.memory_space<vmem>>, vector<16x128xf32>,
    return
  }
  func.func @transform_0(%arg0: i32) -> (i32, i32) {
    %c0_i32 = arith.constant 0 : i32
    %c0_i32_0 = arith.constant 0 : i32
    return %arg0, %c0_i32 : i32, i32
  }
  func.func @transform_1(%arg0: i32) -> (i32, i32) {
    %c0_i32 = arith.constant 0 : i32
    %c0_i32_0 = arith.constant 0 : i32
    %c0_i32_1 = arith.constant 0 : i32
    return %c0_i32, %c0_i32_0 : i32, i32
  }
  func.func @transform_2(%arg0: i32) -> (i32, i32) {
    %c0_i32 = arith.constant 0 : i32
    %c0_i32_0 = arith.constant 0 : i32
    %c0_i32_1 = arith.constant 0 : i32
    return %c0_i32, %c0_i32_0 : i32, i32
  }
  func.func @transform_3(%arg0: i32) -> (i32, i32) {
    %c0_i32 = arith.constant 0 : i32
    %c0_i32_0 = arith.constant 0 : i32
    %c0_i32_1 = arith.constant 0 : i32
    return %c0_i32, %c0_i32_0 : i32, i32
  }
  func.func @transform_4(%arg0: i32) -> (i32, i32) {
    %c0_i32 = arith.constant 0 : i32
    %c0_i32_0 = arith.constant 0 : i32
    %c0_i32_1 = arith.constant 0 : i32
    return %c0_i32, %c0_i32_0 : i32, i32
  }
  func.func @transform_5(%arg0: i32) -> (i32, i32) {
    %c0_i32 = arith.constant 0 : i32
    %c0_i32_0 = arith.constant 0 : i32
    return %arg0, %c0_i32 : i32, i32
  }
}

</mosaic_0001>

<llo_original>
// kernel: tpu_custom_call.1
$region0: #{tpu_custom_call.1}
  #allocation0 [shape = 'u32[]', space=smem, size = 0x4, offset = 0x4, fixed_abs, tag = 'smem constant byte address 0x4 - core index']
  #allocation1 [shape = 'u32[144,128]{1,0:T(1,128)}', space=vmem, size = 0x12000, scoped, tag = 'internal scratch']
  %s0 = inlined_call_operand.hbm [shape: f32[16,128], index: 0, kind: input, shape index: {}]
  %s1 = inlined_call_operand.hbm [shape: bf16[128,128], index: 1, kind: input, shape index: {}]
  %s2 = inlined_call_operand.vmem [shape: f32[1,128], index: 2, kind: input, shape index: {}]
  %s3 = inlined_call_operand.hbm [shape: bf16[128,128], index: 3, kind: input, shape index: {}]
  %s4 = inlined_call_operand.vmem [shape: f32[1,128], index: 4, kind: input, shape index: {}]
  %s5 = inlined_call_operand.hbm [shape: f32[16,128], index: 5, kind: output, shape index: {}]
  %s6 = sld [smem:[#allocation0]]
  $region42: #{tpu_custom_call.1} parent=0
    _
  %s8 = ssub.s32 1, %s6
  %s9 = scalar_select 0, %s8, %s6
  $region1: #{tpu_custom_call.1} parent=0
    #allocation2 [shape = 'u8[8192]{0}', space=vmem, size = 0x2000, scoped, tag = 'input window, operand 0, single buffered']
    #allocation3 [shape = 's32[1]{0}', space=sflag, size = 0x4, scoped, tag = 'scoped memory for tpu_custom_call.1']
    #allocation4 [shape = 's32[1]{0}', space=sflag, size = 0x4, scoped, tag = 'scoped memory for tpu_custom_call.1']
    #allocation5 [shape = 'u8[32768]{0}', space=vmem, size = 0x8000, scoped, tag = 'input window, operand 1, single buffered']
    #allocation6 [shape = 's32[1]{0}', space=sflag, size = 0x4, scoped, tag = 'scoped memory for tpu_custom_call.1']
    #allocation7 [shape = 'u8[32768]{0}', space=vmem, size = 0x8000, scoped, tag = 'input window, operand 3, single buffered']
    #allocation8 [shape = 'u8[8192]{0}', space=vmem, size = 0x2000, scoped, tag = 'output window, operand 0, single buffered']
    %10 = vsyncpa [#allocation3], 0
    %11 = vsyncpa [#allocation6], 0
    %12 = vsyncpa [#allocation4], 0
    // Predicated region
    $region2: #{tpu_custom_call.1} parent=1 // pred_check
      _
    $region3: #{tpu_custom_call.1} parent=1 // pred_check_branch
      %14 = sbr.rel (0) target = $region5
    $region4: #{tpu_custom_call.1} parent=1 // pred_region
      %s16 = ssub.s32 256, 256
      %17 = vsyncadd [#allocation3], %s16
      %s18 = sshll.u32 [#allocation2], 4
      %s19 = int_to_ptr.vmem [resolvable:$true] %s18
      %24 = dma.hbm_to_vmem [thread:$0]  %s0, 256, %s19, [#allocation3], 128, 128, 8
    $region5: #{tpu_custom_call.1} parent=1 // pred_fallthru
      _
    // Predicated region
    $region6: #{tpu_custom_call.1} parent=1 // pred_check
      _
    $region7: #{tpu_custom_call.1} parent=1 // pred_check_branch
      %26 = sbr.rel (0) target = $region9
    $region8: #{tpu_custom_call.1} parent=1 // pred_region
      %s28 = ssub.s32 1024, 1024
      %29 = vsyncadd [#allocation6], %s28
      %s30 = sshll.u32 [#allocation5], 4
      %s31 = int_to_ptr.vmem [resolvable:$true] %s30
      %36 = dma.hbm_to_vmem [thread:$0]  %s1, 1024, %s31, [#allocation6], 64, 64, 4
    $region9: #{tpu_custom_call.1} parent=1 // pred_fallthru
      _
    // Predicated region
    $region10: #{tpu_custom_call.1} parent=1 // pred_check
      _
    $region11: #{tpu_custom_call.1} parent=1 // pred_check_branch
      %38 = sbr.rel (0) target = $region13
    $region12: #{tpu_custom_call.1} parent=1 // pred_region
      _
    $region13: #{tpu_custom_call.1} parent=1 // pred_fallthru
      _
    // Predicated region
    $region14: #{tpu_custom_call.1} parent=1 // pred_check
      _
    $region15: #{tpu_custom_call.1} parent=1 // pred_check_branch
      %40 = sbr.rel (0) target = $region17
    $region16: #{tpu_custom_call.1} parent=1 // pred_region
      %s42 = ssub.s32 1024, 1024
      %43 = vsyncadd [#allocation6], %s42
      %s44 = sshll.u32 [#allocation7], 4
      %s45 = int_to_ptr.vmem [resolvable:$true] %s44
      %50 = dma.hbm_to_vmem [thread:$0]  %s3, 1024, %s45, [#allocation6], 64, 64, 4
    $region17: #{tpu_custom_call.1} parent=1 // pred_fallthru
      _
    // Predicated region
    $region18: #{tpu_custom_call.1} parent=1 // pred_check
      _
    $region19: #{tpu_custom_call.1} parent=1 // pred_check_branch
      %52 = sbr.rel (0) target = $region21
    $region20: #{tpu_custom_call.1} parent=1 // pred_region
      _
    $region21: #{tpu_custom_call.1} parent=1 // pred_fallthru
      _
    // Predicated region
    $region22: #{tpu_custom_call.1} parent=1 // pred_check
      _
    $region23: #{tpu_custom_call.1} parent=1 // pred_check_branch
      %54 = sbr.rel (0) target = $region25
    $region24: #{tpu_custom_call.1} parent=1 // pred_region
      %55 = dma.done [#allocation3], 256
    $region25: #{tpu_custom_call.1} parent=1 // pred_fallthru
      _
    // Predicated region
    $region26: #{tpu_custom_call.1} parent=1 // pred_check
      _
    $region27: #{tpu_custom_call.1} parent=1 // pred_check_branch
      %57 = sbr.rel (0) target = $region29
    $region28: #{tpu_custom_call.1} parent=1 // pred_region
      %58 = dma.done [#allocation6], 1024
    $region29: #{tpu_custom_call.1} parent=1 // pred_fallthru
      _
    // Predicated region
    $region30: #{tpu_custom_call.1} parent=1 // pred_check
      _
    $region31: #{tpu_custom_call.1} parent=1 // pred_check_branch
      %60 = sbr.rel (0) target = $region33
    $region32: #{tpu_custom_call.1} parent=1 // pred_region
      %61 = dma.done [#allocation6], 1024
    $region33: #{tpu_custom_call.1} parent=1 // pred_fallthru
      _
    %v63 = vld [vmem:[#allocation2] sm:$0xff]
    %v64 = vld [vmem:[#allocation2 + $0x8] sm:$0xff]
    %v65 = vpack.c.bf16 %v64, %v63
    %v66 = vld [vmem:[#allocation5] sm:$0xf]
    %v67 = vld [vmem:[#allocation5 + $0x4] sm:$0xf]
    %v68 = vld [vmem:[#allocation5 + $0x8] sm:$0xf]
    %v69 = vld [vmem:[#allocation5 + $0xc] sm:$0xf]
    %v70 = vld [vmem:[#allocation5 + $0x10] sm:$0xf]
    %v71 = vld [vmem:[#allocation5 + $0x14] sm:$0xf]
    %v72 = vld [vmem:[#allocation5 + $0x18] sm:$0xf]
    %v73 = vld [vmem:[#allocation5 + $0x1c] sm:$0xf]
    %v74 = vld [vmem:[#allocation5 + $0x20] sm:$0xf]
    %v75 = vld [vmem:[#allocation5 + $0x24] sm:$0xf]
    %v76 = vld [vmem:[#allocation5 + $0x28] sm:$0xf]
    %v77 = vld [vmem:[#allocation5 + $0x2c] sm:$0xf]
    %v78 = vld [vmem:[#allocation5 + $0x30] sm:$0xf]
    %v79 = vld [vmem:[#allocation5 + $0x34] sm:$0xf]
    %v80 = vld [vmem:[#allocation5 + $0x38] sm:$0xf]
    %v81 = vld [vmem:[#allocation5 + $0x3c] sm:$0xf]
    %v82 = vld [vmem:[%s2] sm:$0x1]
    %v84 = vlaneseq
    %v85 = vshrl.u32 %v84, 7
    %v86 = vsub.s32 0, %v85
    %v87 = vrot.slane %v82, %v86
    %v105 = vunpack.c.l.b16 %v66
    %v106 = vunpack.c.l.b16 %v67
    %v107 = vunpack.c.l.b16 %v68
    %v108 = vunpack.c.l.b16 %v69
    %v109 = vunpack.c.l.b16 %v70
    %v110 = vunpack.c.l.b16 %v71
    %v111 = vunpack.c.l.b16 %v72
    %v112 = vunpack.c.l.b16 %v73
    %v113 = vunpack.c.l.b16 %v74
    %v114 = vunpack.c.l.b16 %v75
    %v115 = vunpack.c.l.b16 %v76
    %v116 = vunpack.c.l.b16 %v77
    %v117 = vunpack.c.l.b16 %v78
    %v118 = vunpack.c.l.b16 %v79
    %v119 = vunpack.c.l.b16 %v80
    %v120 = vunpack.c.l.b16 %v81
    %v121 = vpack.c.b16 %v106, %v105
    %v122 = vpack.c.b16 %v108, %v107
    %v123 = vpack.c.b16 %v110, %v109
    %v124 = vpack.c.b16 %v112, %v111
    %v125 = vpack.c.b16 %v114, %v113
    %v126 = vpack.c.b16 %v116, %v115
    %v127 = vpack.c.b16 %v118, %v117
    %v128 = vpack.c.b16 %v120, %v119
    %137 = vmatprep.subr.bf16.mxu0 0
    %138 = vmatpush1.bf16.msra.mxu0 %v128
    %139 = vmatprep.subr.bf16.mxu0 0
    %140 = vmatpush1.bf16.msra.mxu0 %v127
    %141 = vmatprep.subr.bf16.mxu0 0
    %142 = vmatpush1.bf16.msra.mxu0 %v126
    %143 = vmatprep.subr.bf16.mxu0 0
    %144 = vmatpush1.bf16.msra.mxu0 %v125
    %145 = vmatprep.subr.bf16.mxu0 0
    %146 = vmatpush1.bf16.msra.mxu0 %v124
    %147 = vmatprep.subr.bf16.mxu0 0
    %148 = vmatpush1.bf16.msra.mxu0 %v123
    %149 = vmatprep.subr.bf16.mxu0 0
    %150 = vmatpush1.bf16.msra.mxu0 %v122
    %151 = vmatprep.subr.bf16.mxu0 0
    %152 = vmatpush1.bf16.msra.mxu0 %v121
    %153 = vmatprep.subr.bf16.mxu0 0
    %154 = vmatpush2.bf16.msra.mxu0 0
    %155 = vmatprep.subr.bf16.mxu0 0
    %156 = vmatpush2.bf16.msra.mxu0 0
    %157 = vmatprep.subr.bf16.mxu0 0
    %158 = vmatpush2.bf16.msra.mxu0 0
    %159 = vmatprep.subr.bf16.mxu0 0
    %160 = vmatpush2.bf16.msra.mxu0 0
    %161 = vmatprep.subr.bf16.mxu0 0
    %162 = vmatpush2.bf16.msra.mxu0 0
    %163 = vmatprep.subr.bf16.mxu0 0
    %164 = vmatpush2.bf16.msra.mxu0 0
    %165 = vmatprep.subr.bf16.mxu0 0
    %166 = vmatpush2.bf16.msra.mxu0 0
    %167 = vmatprep.subr.bf16.mxu0 0
    %168 = vmatpush2.bf16.msra.mxu0 0
    %169 = vmatprep.mubr.bf16.mxu0 0
    %170 = vmatmul.mubr.bf16.gmra.mxu0 %v65
    %v171 = vpop.f32.mrf.mxu0
    %v172 = vadd.f32 %v87, %v171
    %v173 = vpop.f32.mrf.mxu0
    %v174 = vpop.f32.mrf.mxu0
    %v175 = vadd.f32 %v87, %v174
    %v176 = vpop.f32.mrf.mxu0
    %177 = vdwg.mxu0
    %v178 = vxor.u32 %v172, 2147483648
    %v179 = vxor.u32 %v175, 2147483648
    %v180 = vmul.f32 %v178, 1.442695
    %v181 = vpow.pop %v180
    %v182 = vmul.f32 %v179, 1.442695
    %v183 = vpow.pop %v182
    %v184 = vadd.f32 %v181, 1.0
    %v185 = vadd.f32 %v183, 1.0
    %v186 = vrcp.pop %v184
    %v187 = vmul.f32 1.0, %v186
    %v188 = vrcp.pop %v185
    %v189 = vmul.f32 1.0, %v188
    %v190 = vmul.f32 %v172, %v187
    %v191 = vmul.f32 %v175, %v189
    %v192 = vpack.c.bf16 %v191, %v190
    %v193 = vld [vmem:[#allocation7] sm:$0xf]
    %v194 = vld [vmem:[#allocation7 + $0x4] sm:$0xf]
    %v195 = vld [vmem:[#allocation7 + $0x8] sm:$0xf]
    %v196 = vld [vmem:[#allocation7 + $0xc] sm:$0xf]
    %v197 = vld [vmem:[#allocation7 + $0x10] sm:$0xf]
    %v198 = vld [vmem:[#allocation7 + $0x14] sm:$0xf]
    %v199 = vld [vmem:[#allocation7 + $0x18] sm:$0xf]
    %v200 = vld [vmem:[#allocation7 + $0x1c] sm:$0xf]
    %v201 = vld [vmem:[#allocation7 + $0x20] sm:$0xf]
    %v202 = vld [vmem:[#allocation7 + $0x24] sm:$0xf]
    %v203 = vld [vmem:[#allocation7 + $0x28] sm:$0xf]
    %v204 = vld [vmem:[#allocation7 + $0x2c] sm:$0xf]
    %v205 = vld [vmem:[#allocation7 + $0x30] sm:$0xf]
    %v206 = vld [vmem:[#allocation7 + $0x34] sm:$0xf]
    %v207 = vld [vmem:[#allocation7 + $0x38] sm:$0xf]
    %v208 = vld [vmem:[#allocation7 + $0x3c] sm:$0xf]
    %v209 = vld [vmem:[%s4] sm:$0x1]
    %v211 = vlaneseq
    %v212 = vshrl.u32 %v211, 7
    %v213 = vsub.s32 0, %v212
    %v214 = vrot.slane %v209, %v213
    %v232 = vunpack.c.l.b16 %v193
    %v233 = vunpack.c.l.b16 %v194
    %v234 = vunpack.c.l.b16 %v195
    %v235 = vunpack.c.l.b16 %v196
    %v236 = vunpack.c.l.b16 %v197
    %v237 = vunpack.c.l.b16 %v198
    %v238 = vunpack.c.l.b16 %v199
    %v239 = vunpack.c.l.b16 %v200
    %v240 = vunpack.c.l.b16 %v201
    %v241 = vunpack.c.l.b16 %v202
    %v242 = vunpack.c.l.b16 %v203
    %v243 = vunpack.c.l.b16 %v204
    %v244 = vunpack.c.l.b16 %v205
    %v245 = vunpack.c.l.b16 %v206
    %v246 = vunpack.c.l.b16 %v207
    %v247 = vunpack.c.l.b16 %v208
    %v248 = vpack.c.b16 %v233, %v232
    %v249 = vpack.c.b16 %v235, %v234
    %v250 = vpack.c.b16 %v237, %v236
    %v251 = vpack.c.b16 %v239, %v238
    %v252 = vpack.c.b16 %v241, %v240
    %v253 = vpack.c.b16 %v243, %v242
    %v254 = vpack.c.b16 %v245, %v244
    %v255 = vpack.c.b16 %v247, %v246
    %264 = vmatprep.subr.bf16.mxu0 0
    %265 = vmatpush1.bf16.msra.mxu0 %v255
    %266 = vmatprep.subr.bf16.mxu0 0
    %267 = vmatpush1.bf16.msra.mxu0 %v254
    %268 = vmatprep.subr.bf16.mxu0 0
    %269 = vmatpush1.bf16.msra.mxu0 %v253
    %270 = vmatprep.subr.bf16.mxu0 0
    %271 = vmatpush1.bf16.msra.mxu0 %v252
    %272 = vmatprep.subr.bf16.mxu0 0
    %273 = vmatpush1.bf16.msra.mxu0 %v251
    %274 = vmatprep.subr.bf16.mxu0 0
    %275 = vmatpush1.bf16.msra.mxu0 %v250
    %276 = vmatprep.subr.bf16.mxu0 0
    %277 = vmatpush1.bf16.msra.mxu0 %v249
    %278 = vmatprep.subr.bf16.mxu0 0
    %279 = vmatpush1.bf16.msra.mxu0 %v248
    %280 = vmatprep.subr.bf16.mxu0 0
    %281 = vmatpush2.bf16.msra.mxu0 0
    %282 = vmatprep.subr.bf16.mxu0 0
    %283 = vmatpush2.bf16.msra.mxu0 0
    %284 = vmatprep.subr.bf16.mxu0 0
    %285 = vmatpush2.bf16.msra.mxu0 0
    %286 = vmatprep.subr.bf16.mxu0 0
    %287 = vmatpush2.bf16.msra.mxu0 0
    %288 = vmatprep.subr.bf16.mxu0 0
    %289 = vmatpush2.bf16.msra.mxu0 0
    %290 = vmatprep.subr.bf16.mxu0 0
    %291 = vmatpush2.bf16.msra.mxu0 0
    %292 = vmatprep.subr.bf16.mxu0 0
    %293 = vmatpush2.bf16.msra.mxu0 0
    %294 = vmatprep.subr.bf16.mxu0 0
    %295 = vmatpush2.bf16.msra.mxu0 0
    %296 = vmatprep.mubr.bf16.mxu0 0
    %297 = vmatmul.mubr.bf16.gmra.mxu0 %v192
    %v298 = vpop.f32.mrf.mxu0
    %v299 = vadd.f32 %v214, %v298
    %v300 = vpop.f32.mrf.mxu0
    %v301 = vpop.f32.mrf.mxu0
    %v302 = vadd.f32 %v214, %v301
    %v303 = vpop.f32.mrf.mxu0
    %304 = vdwg.mxu0
    %305 = vst [vmem:[#allocation8] sm:$0xff] %v299
    %306 = vst [vmem:[#allocation8 + $0x8] sm:$0xff] %v302
    // Predicated region
    $region34: #{tpu_custom_call.1} parent=1 // pred_check
      _
    $region35: #{tpu_custom_call.1} parent=1 // pred_check_branch
      %308 = sbr.rel (0) target = $region37
    $region36: #{tpu_custom_call.1} parent=1 // pred_region
      %s310 = ssub.s32 256, 256
      %311 = vsyncadd [#allocation4], %s310
      %s312 = sshll.u32 [#allocation8], 4
      %s313 = int_to_ptr.vmem [resolvable:$true] %s312
      %318 = dma.vmem_to_hbm [thread:$0]  %s313, 256, %s5, [#allocation4], 128, 128, 8
    $region37: #{tpu_custom_call.1} parent=1 // pred_fallthru
      _
    // Predicated region
    $region38: #{tpu_custom_call.1} parent=1 // pred_check
      _
    $region39: #{tpu_custom_call.1} parent=1 // pred_check_branch
      %320 = sbr.rel (0) target = $region41
    $region40: #{tpu_custom_call.1} parent=1 // pred_region
      %321 = dma.done [#allocation4], 256
    $region41: #{tpu_custom_call.1} parent=1 // pred_fallthru
      _
    %322 = vsyncpa [#allocation3], 1
    %323 = vsyncpa [#allocation6], 1
    %324 = vsyncpa [#allocation4], 1

</llo_original>
